<compile_context>
chip_gen: v6e
topology: v6e:2x2x1
jax: 0.10.0
libtpu: 0.0.40
codegen_flags: <defaults>
</compile_context>

<pallas_src>
import jax
import jax.numpy as jnp
from jax.experimental import pallas as pl
from jax.experimental.pallas import tpu as pltpu


def _generator_kernel(x_ref, w1_ref, b1_ref, w2_ref, b2_ref, out_ref, h_ref):
    # Layer 1 is computed once per batch tile (first output tile only) and
    # cached in the f32 VMEM scratch; all subsequent output tiles reuse it.
    @pl.when(pl.program_id(1) == 0)
    def _():
        h = jnp.dot(x_ref[...], w1_ref[...], preferred_element_type=jnp.float32)
        h_ref[...] = jnp.maximum(h + b1_ref[...], 0.0)

    # Layer 2: bf16 MXU matmul against the current W2 output tile, f32 accum,
    # bias add in f32, store directly in the caller's dtype.
    y = jnp.dot(h_ref[...].astype(w2_ref.dtype), w2_ref[...],
                preferred_element_type=jnp.float32)
    out_ref[...] = (y + b2_ref[...]).astype(out_ref.dtype)


def _round_up(x, m):
    return (x + m - 1) // m * m


def prepare_generator_params(w1, b1, w2, b2):
    """One-time preprocessing of PyTorch-layout Linear weights.

    w1: (H, L), b1: (H,), w2: (O, H), b2: (O,)   [PyTorch W is (out, in)]
    Returns kernel-ready params: transposed to (in, out), cast to bf16 (the MXU
    operand dtype), output dim padded up to a 128 multiple (lane-dense stores),
    biases kept in f32.  Hoisting this out of the forward path removes a full
    f32 read + bf16 write of both weight matrices per call.
    """
    H, L = w1.shape
    O = w2.shape[0]
    Op = _round_up(O, 128)
    w1_t = jnp.asarray(w1).T.astype(jnp.bfloat16)              # (L, H)
    b1_f = jnp.asarray(b1).astype(jnp.float32).reshape(1, H)   # (1, H)
    w2_t = jnp.asarray(w2).T.astype(jnp.bfloat16)              # (H, O)
    b2_f = jnp.asarray(b2).astype(jnp.float32)
    if Op != O:
        w2_t = jnp.pad(w2_t, ((0, 0), (0, Op - O)))
        b2_f = jnp.pad(b2_f, (0, Op - O))
    return {
        "w1": w1_t,
        "b1": b1_f,
        "w2": w2_t,
        "b2": b2_f.reshape(1, Op),
        "out_dim": O,
    }


# Working-set budget for one grid cell's double-buffered streams + scratch.
# Conservative enough for v7x's 64 MiB VMEM per TensorCore; v5e/v6e (128 MiB)
# simply get extra headroom.
_VMEM_WORKING_BUDGET = 24 * 1024 * 1024


def simple_generator_forward(x, params, *, tile_b=256):
    """x: (B, L) float; params from prepare_generator_params."""
    w1, b1, w2, b2 = params["w1"], params["b1"], params["w2"], params["b2"]
    O = params["out_dim"]
    B, L = x.shape
    H = w1.shape[1]
    Op = w2.shape[1]
    out_dtype = x.dtype
    out_bytes = jnp.dtype(out_dtype).itemsize

    # Only per-call cast is the (tiny) activation.
    x_bf = x.astype(jnp.bfloat16)

    # --- batch tiling -------------------------------------------------------
    if B > tile_b:
        TILE_B = tile_b
        Bp = _round_up(B, TILE_B)
        if Bp != B:
            x_bf = jnp.pad(x_bf, ((0, Bp - B), (0, 0)))
    else:
        # Tiny-batch regime: one batch tile, no extra grid steps (MXU is far
        # from the bottleneck; roofline is pure weight DMA).
        TILE_B = B
        Bp = B

    # --- output tiling: largest 128-multiple divisor of Op within budget ----
    const_bytes = (2 * TILE_B * L * 2      # x tile (bf16, double-buffered)
                   + 2 * L * H * 2         # W1 (grid-invariant block)
                   + 2 * H * 4             # b1
                   + TILE_B * H * 4)       # h scratch (f32)
    per_col = 2 * H * 2 + 2 * 4 + 2 * TILE_B * out_bytes  # W2 + b2 + out streams
    col_budget = max((_VMEM_WORKING_BUDGET - const_bytes) // per_col, 128)
    TILE_O = 128
    t = 128
    while t <= min(Op, col_budget):
        if Op % t == 0:
            TILE_O = t
        t += 128

    grid = (Bp // TILE_B, Op // TILE_O)
    n_b = grid[0]

    # vmem_limit derived from actual tile bytes (+50% headroom), clamped to a
    # portable range (never below the 32 MiB default scope, never above v7x's
    # 64 MiB physical VMEM).
    est_vmem = const_bytes + per_col * TILE_O
    vmem_limit = int(min(max(32 * 1024 * 1024, est_vmem * 3 // 2 + (2 << 20)),
                         64 * 1024 * 1024))

    cost = pl.CostEstimate(
        flops=2 * Bp * L * H + 2 * Bp * H * Op,
        transcendentals=0,
        # NOTE: with the output axis innermost, W2 streams once per batch tile;
        # for this module's batch sizes n_b == 1, so each weight byte is DMA'd
        # exactly once per forward.
        bytes_accessed=(x_bf.size * 2 + w1.size * 2 + b1.size * 4
                        + n_b * (w2.size * 2 + b2.size * 4)
                        + Bp * Op * out_bytes),
    )

    out = pl.pallas_call(
        _generator_kernel,
        out_shape=jax.ShapeDtypeStruct((Bp, Op), out_dtype),
        grid=grid,
        in_specs=[
            pl.BlockSpec((TILE_B, L), lambda i, j: (i, 0)),   # x (constant in j)
            pl.BlockSpec((L, H), lambda i, j: (0, 0)),        # W1 (grid-invariant)
            pl.BlockSpec((1, H), lambda i, j: (0, 0)),        # b1 (grid-invariant)
            pl.BlockSpec((H, TILE_O), lambda i, j: (0, j)),   # W2 output tiles
            pl.BlockSpec((1, TILE_O), lambda i, j: (0, j)),   # b2 output tiles
        ],
        out_specs=pl.BlockSpec((TILE_B, TILE_O), lambda i, j: (i, j)),
        scratch_shapes=[pltpu.VMEM((TILE_B, H), jnp.float32)],  # cached relu(xW1+b1)
        compiler_params=pltpu.CompilerParams(
            # The output axis must be "arbitrary": the cached h scratch is only
            # written at j == 0 and reused sequentially for the remaining output
            # tiles of the same batch tile.  The batch axis stays "parallel"
            # (megacore sharding when B is large enough to split).
            dimension_semantics=("parallel", "arbitrary"),
            vmem_limit_bytes=vmem_limit,
        ),
        cost_estimate=cost,
    )(x_bf, w1, b1, w2, b2)

    if Bp != B or Op != O:
        out = out[:B, :O]
    return out


if __name__ == "__main__":
    # Module config (small): latent_size=32, image_shape=(16, 16) -> output dim 256
    latent_size = 32
    image_shape = (16, 16)
    hidden = 2 * latent_size
    out_dim = image_shape[0] * image_shape[1]
    batch = 2

    key = jax.random.PRNGKey(0)
    kx, kw1, kb1, kw2, kb2 = jax.random.split(key, 5)

    # PyTorch Linear keeps W as (out, in).
    x = jax.random.normal(kx, (batch, latent_size), dtype=jnp.float32)
    w1 = jax.random.normal(kw1, (hidden, latent_size), dtype=jnp.float32) * 0.1
    b1 = jax.random.normal(kb1, (hidden,), dtype=jnp.float32) * 0.1
    w2 = jax.random.normal(kw2, (out_dim, hidden), dtype=jnp.float32) * 0.1
    b2 = jax.random.normal(kb2, (out_dim,), dtype=jnp.float32) * 0.1

    # One-time weight preprocessing (hoisted out of the forward path).
    params = prepare_generator_params(w1, b1, w2, b2)

    out = simple_generator_forward(x, params)
    out = jax.block_until_ready(out)
    assert out.shape == (batch, out_dim)

    # bf16-faithful reference (same casts / f32 accumulation as the kernel).
    h_ref = jnp.maximum(
        jnp.dot(x.astype(jnp.bfloat16), w1.T.astype(jnp.bfloat16),
                preferred_element_type=jnp.float32) + b1, 0.0)
    ref_bf = jnp.dot(h_ref.astype(jnp.bfloat16), w2.T.astype(jnp.bfloat16),
                     preferred_element_type=jnp.float32) + b2
    assert jnp.allclose(out, ref_bf, atol=1e-2, rtol=1e-2)

    # Sanity vs full-f32 math (loose: bf16 quantization of operands).
    ref_f32 = jnp.maximum(x @ w1.T + b1, 0.0) @ w2.T + b2
    assert jnp.allclose(out, ref_f32, atol=5e-2, rtol=5e-2)

    print("KERNEL_OK")
</pallas_src>

<mosaic_0001>
module attributes {stable_mosaic.version = 11 : i64} {
  func.func @_generator_kernel(%arg0: i32, %arg1: i32, %arg2: memref<2x32xbf16, #tpu.memory_space<vmem>>, %arg3: memref<32x64xbf16, #tpu.memory_space<vmem>>, %arg4: memref<1x64xf32, #tpu.memory_space<vmem>>, %arg5: memref<64x256xbf16, #tpu.memory_space<vmem>>, %arg6: memref<1x256xf32, #tpu.memory_space<vmem>>, %arg7: memref<2x256xf32, #tpu.memory_space<vmem>>, %arg8: memref<2x64xf32, #tpu.memory_space<vmem>>) attributes {dimension_semantics = [#tpu.dimension_semantics<parallel>, #tpu.dimension_semantics<arbitrary>], iteration_bounds = array<i64: 1, 1>, scalar_prefetch = 0 : i64, scratch_operands = 1 : i64, tpu.core_type = #tpu.core_type<tc>, window_params = [{transform_indices = @transform_0, window_bounds = array<i64: 2, 32>}, {pipeline_mode = #tpu.pipeline_mode<synchronous>, transform_indices = @transform_1, window_bounds = array<i64: 32, 64>}, {pipeline_mode = #tpu.pipeline_mode<synchronous>, transform_indices = @transform_2, window_bounds = array<i64: 1, 64>}, {transform_indices = @transform_3, window_bounds = array<i64: 64, 256>}, {transform_indices = @transform_4, window_bounds = array<i64: 1, 256>}, {transform_indices = @transform_5, window_bounds = array<i64: 2, 256>}]} {
    %c0_i32 = arith.constant 0 : i32
    %0 = arith.cmpi eq, %arg1, %c0_i32 : i32
    %1 = arith.extui %0 : i1 to i32
    %c0_i32_0 = arith.constant 0 : i32
    %2 = arith.cmpi ne, %1, %c0_i32_0 : i32
    scf.if %2 {
      %c0_8 = arith.constant 0 : index
      %c0_9 = arith.constant 0 : index
      %11 = vector.load %arg2[%c0_8, %c0_9] : memref<2x32xbf16, #tpu.memory_space<vmem>>, vector<2x32xbf16>
      %c0_10 = arith.constant 0 : index
      %c0_11 = arith.constant 0 : index
      %12 = vector.load %arg3[%c0_10, %c0_11] : memref<32x64xbf16, #tpu.memory_space<vmem>>, vector<32x64xbf16>
      %cst_12 = arith.constant dense<0.000000e+00> : vector<2x64xf32>
      %13 = tpu.matmul %11, %12, %cst_12 {dimension_numbers = #tpu.dot_dimension_numbers<[1], [0], [0], [1], [0, 0, 1, 1], [], []>} : vector<2x32xbf16>, vector<32x64xbf16>, vector<2x64xf32> -> vector<2x64xf32>
      %c0_13 = arith.constant 0 : index
      %c0_14 = arith.constant 0 : index
      %14 = vector.load %arg4[%c0_13, %c0_14] : memref<1x64xf32, #tpu.memory_space<vmem>>, vector<1x64xf32>
      %15 = vector.broadcast %14 : vector<1x64xf32> to vector<2x64xf32>
      %16 = arith.addf %13, %15 : vector<2x64xf32>
      %cst_15 = arith.constant 0.000000e+00 : f32
      %17 = vector.broadcast %cst_15 : f32 to vector<2x64xf32>
      %18 = arith.maximumf %16, %17 : vector<2x64xf32>
      %c0_16 = arith.constant 0 : index
      %c0_17 = arith.constant 0 : index
      %19 = vector.load %arg8[%c0_16, %c0_17] : memref<2x64xf32, #tpu.memory_space<vmem>>, vector<2x64xf32>
      tpu.vector_store %arg8[%c0_16, %c0_17], %18 {strides = array<i32>} : memref<2x64xf32, #tpu.memory_space<vmem>>, vector<2x64xf32>,
    } else {
    }
    %c0 = arith.constant 0 : index
    %c0_1 = arith.constant 0 : index
    %3 = vector.load %arg8[%c0, %c0_1] : memref<2x64xf32, #tpu.memory_space<vmem>>, vector<2x64xf32>
    %4 = arith.truncf %3 : vector<2x64xf32> to vector<2x64xbf16>
    %c0_2 = arith.constant 0 : index
    %c0_3 = arith.constant 0 : index
    %5 = vector.load %arg5[%c0_2, %c0_3] : memref<64x256xbf16, #tpu.memory_space<vmem>>, vector<64x256xbf16>
    %cst = arith.constant dense<0.000000e+00> : vector<2x256xf32>
    %6 = tpu.matmul %4, %5, %cst {dimension_numbers = #tpu.dot_dimension_numbers<[1], [0], [0], [1], [0, 0, 1, 1], [], []>} : vector<2x64xbf16>, vector<64x256xbf16>, vector<2x256xf32> -> vector<2x256xf32>
    %c0_4 = arith.constant 0 : index
    %c0_5 = arith.constant 0 : index
    %7 = vector.load %arg6[%c0_4, %c0_5] : memref<1x256xf32, #tpu.memory_space<vmem>>, vector<1x256xf32>
    %8 = vector.broadcast %7 : vector<1x256xf32> to vector<2x256xf32>
    %9 = arith.addf %6, %8 : vector<2x256xf32>
    %c0_6 = arith.constant 0 : index
    %c0_7 = arith.constant 0 : index
    %10 = vector.load %arg7[%c0_6, %c0_7] : memref<2x256xf32, #tpu.memory_space<vmem>>, vector<2x256xf32>
    tpu.vector_store %arg7[%c0_6, %c0_7], %9 {strides = array<i32>} : memref<2x256xf32, #tpu.memory_space<vmem>>, vector<2x256xf32>,
    return
  }
  func.func @transform_0(%arg0: i32, %arg1: i32) -> (i32, i32) {
    %c0_i32 = arith.constant 0 : i32
    %c0_i32_0 = arith.constant 0 : i32
    return %arg0, %c0_i32 : i32, i32
  }
  func.func @transform_1(%arg0: i32, %arg1: i32) -> (i32, i32) {
    %c0_i32 = arith.constant 0 : i32
    %c0_i32_0 = arith.constant 0 : i32
    %c0_i32_1 = arith.constant 0 : i32
    return %c0_i32, %c0_i32_0 : i32, i32
  }
  func.func @transform_2(%arg0: i32, %arg1: i32) -> (i32, i32) {
    %c0_i32 = arith.constant 0 : i32
    %c0_i32_0 = arith.constant 0 : i32
    %c0_i32_1 = arith.constant 0 : i32
    return %c0_i32, %c0_i32_0 : i32, i32
  }
  func.func @transform_3(%arg0: i32, %arg1: i32) -> (i32, i32) {
    %c0_i32 = arith.constant 0 : i32
    %c0_i32_0 = arith.constant 0 : i32
    return %c0_i32, %arg1 : i32, i32
  }
  func.func @transform_4(%arg0: i32, %arg1: i32) -> (i32, i32) {
    %c0_i32 = arith.constant 0 : i32
    %c0_i32_0 = arith.constant 0 : i32
    return %c0_i32, %arg1 : i32, i32
  }
  func.func @transform_5(%arg0: i32, %arg1: i32) -> (i32, i32) {
    %c0_i32 = arith.constant 0 : i32
    return %arg0, %arg1 : i32, i32
  }
}

</mosaic_0001>

<llo_original>
// kernel: tpu_custom_call.1
$region0: #{tpu_custom_call.1}
  #allocation0 [shape = 'u32[]', space=smem, size = 0x4, offset = 0x4, fixed_abs, tag = 'smem constant byte address 0x4 - core index']
  #allocation1 [shape = 'u32[144,128]{1,0:T(1,128)}', space=vmem, size = 0x12000, scoped, tag = 'internal scratch']
  #allocation2 [shape = 'f32[2,64]{1,0:T(2,128)}', space=vmem, size = 0x400, scoped, tag = 'scratch operand']
  %s0 = inlined_call_operand.hbm [shape: bf16[2,32], index: 0, kind: input, shape index: {}]
  %s1 = inlined_call_operand.hbm [shape: bf16[32,64], index: 1, kind: input, shape index: {}]
  %s2 = inlined_call_operand.vmem [shape: f32[1,64], index: 2, kind: input, shape index: {}]
  %s3 = inlined_call_operand.hbm [shape: bf16[64,256], index: 3, kind: input, shape index: {}]
  %s4 = inlined_call_operand.vmem [shape: f32[1,256], index: 4, kind: input, shape index: {}]
  %s5 = inlined_call_operand.hbm [shape: f32[2,256], index: 5, kind: output, shape index: {}]
  %s6 = sld [smem:[#allocation0]]
  $region46: #{tpu_custom_call.1} parent=0
    _
  %s8 = ssub.s32 1, %s6
  %s9 = scalar_select 0, %s8, %s6
  $region1: #{tpu_custom_call.1} parent=0
    #allocation3 [shape = 'u8[512]{0}', space=vmem, size = 0x400, scoped, tag = 'input window, operand 0, single buffered']
    #allocation4 [shape = 's32[1]{0}', space=sflag, size = 0x4, scoped, tag = 'scoped memory for tpu_custom_call.1']
    #allocation5 [shape = 's32[1]{0}', space=sflag, size = 0x4, scoped, tag = 'scoped memory for tpu_custom_call.1']
    #allocation6 [shape = 'u8[8192]{0}', space=vmem, size = 0x2000, scoped, tag = 'input window, operand 1, single buffered']
    #allocation7 [shape = 's32[1]{0}', space=sflag, size = 0x4, scoped, tag = 'scoped memory for tpu_custom_call.1']
    #allocation8 [shape = 'u8[32768]{0}', space=vmem, size = 0x8000, scoped, tag = 'input window, operand 3, single buffered']
    #allocation9 [shape = 'u8[2048]{0}', space=vmem, size = 0x800, scoped, tag = 'output window, operand 0, single buffered']
    %10 = vsyncpa [#allocation4], 0
    %11 = vsyncpa [#allocation7], 0
    %12 = vsyncpa [#allocation5], 0
    // Predicated region
    $region2: #{tpu_custom_call.1} parent=1 // pred_check
      _
    $region3: #{tpu_custom_call.1} parent=1 // pred_check_branch
      %14 = sbr.rel (0) target = $region5
    $region4: #{tpu_custom_call.1} parent=1 // pred_region
      %s16 = ssub.s32 16, 16
      %17 = vsyncadd [#allocation4], %s16
      %s19 = sshll.u32 [#allocation3], 4
      %s20 = int_to_ptr.vmem [resolvable:$true] %s19
      %22 = dma.hbm_to_vmem [thread:$0]  %s0, 16, %s20, [#allocation4]
    $region5: #{tpu_custom_call.1} parent=1 // pred_fallthru
      _
    // Predicated region
    $region6: #{tpu_custom_call.1} parent=1 // pred_check
      _
    $region7: #{tpu_custom_call.1} parent=1 // pred_check_branch
      %24 = sbr.rel (0) target = $region9
    $region8: #{tpu_custom_call.1} parent=1 // pred_region
      %s26 = ssub.s32 256, 256
      %27 = vsyncadd [#allocation7], %s26
      %s28 = sshll.u32 [#allocation6], 4
      %s29 = int_to_ptr.vmem [resolvable:$true] %s28
      %34 = dma.hbm_to_vmem [thread:$0]  %s1, 256, %s29, [#allocation7], 64, 64, 4
    $region9: #{tpu_custom_call.1} parent=1 // pred_fallthru
      _
    // Predicated region
    $region10: #{tpu_custom_call.1} parent=1 // pred_check
      _
    $region11: #{tpu_custom_call.1} parent=1 // pred_check_branch
      %36 = sbr.rel (0) target = $region13
    $region12: #{tpu_custom_call.1} parent=1 // pred_region
      _
    $region13: #{tpu_custom_call.1} parent=1 // pred_fallthru
      _
    // Predicated region
    $region14: #{tpu_custom_call.1} parent=1 // pred_check
      _
    $region15: #{tpu_custom_call.1} parent=1 // pred_check_branch
      %38 = sbr.rel (0) target = $region17
    $region16: #{tpu_custom_call.1} parent=1 // pred_region
      %s40 = ssub.s32 1024, 1024
      %41 = vsyncadd [#allocation7], %s40
      %s42 = sshll.u32 [#allocation8], 4
      %s43 = int_to_ptr.vmem [resolvable:$true] %s42
      %48 = dma.hbm_to_vmem [thread:$0]  %s3, 1024, %s43, [#allocation7], 128, 128, 8
    $region17: #{tpu_custom_call.1} parent=1 // pred_fallthru
      _
    // Predicated region
    $region18: #{tpu_custom_call.1} parent=1 // pred_check
      _
    $region19: #{tpu_custom_call.1} parent=1 // pred_check_branch
      %50 = sbr.rel (0) target = $region21
    $region20: #{tpu_custom_call.1} parent=1 // pred_region
      _
    $region21: #{tpu_custom_call.1} parent=1 // pred_fallthru
      _
    // Predicated region
    $region22: #{tpu_custom_call.1} parent=1 // pred_check
      _
    $region23: #{tpu_custom_call.1} parent=1 // pred_check_branch
      %52 = sbr.rel (0) target = $region25
    $region24: #{tpu_custom_call.1} parent=1 // pred_region
      %53 = dma.done [#allocation4], 16
    $region25: #{tpu_custom_call.1} parent=1 // pred_fallthru
      _
    // Predicated region
    $region26: #{tpu_custom_call.1} parent=1 // pred_check
      _
    $region27: #{tpu_custom_call.1} parent=1 // pred_check_branch
      %55 = sbr.rel (0) target = $region29
    $region28: #{tpu_custom_call.1} parent=1 // pred_region
      %56 = dma.done [#allocation7], 256
    $region29: #{tpu_custom_call.1} parent=1 // pred_fallthru
      _
    // Predicated region
    $region30: #{tpu_custom_call.1} parent=1 // pred_check
      _
    $region31: #{tpu_custom_call.1} parent=1 // pred_check_branch
      %58 = sbr.rel (0) target = $region33
    $region32: #{tpu_custom_call.1} parent=1 // pred_region
      %59 = dma.done [#allocation7], 1024
    $region33: #{tpu_custom_call.1} parent=1 // pred_fallthru
      _
    %p61 = scmp.eq.s32.totalorder 0, 0
    // Predicated region
    $region34: #{tpu_custom_call.1} parent=1 // pred_check
      %p62 = pneg %p61
    $region35: #{tpu_custom_call.1} parent=1 // pred_check_branch
      %64 = sbr.rel (%p62) target = $region37
    $region36: #{tpu_custom_call.1} parent=1 // pred_region
      %v65 = vld [vmem:[#allocation3] sm:$0x1]
      %v66 = vld [vmem:[#allocation6] sm:$0xf]
      %v67 = vld [vmem:[#allocation6 + $0x4] sm:$0xf]
      %v68 = vld [vmem:[#allocation6 + $0x8] sm:$0xf]
      %v69 = vld [vmem:[#allocation6 + $0xc] sm:$0xf]
      %v70 = vld [vmem:[%s2] sm:$0x1]
      %v72 = vlaneseq
      %v73 = vshrl.u32 %v72, 7
      %v74 = vsub.s32 0, %v73
      %v75 = vrot.slane %v70, %v74
      %v81 = vunpack.c.l.b16 %v66
      %v82 = vunpack.c.l.b16 %v67
      %v83 = vunpack.c.l.b16 %v68
      %v84 = vunpack.c.l.b16 %v69
      %v85 = vpack.c.b16 %v82, %v81
      %v86 = vpack.c.b16 %v84, %v83
      %vm89 = vcmask 261120
      %v91 = vsel %vm89, %v65, 0
      %93 = vmatprep.subr.bf16.mxu0 0
      %94 = vmatpush1.bf16.msra.mxu0 0
      %95 = vmatprep.subr.bf16.mxu0 0
      %96 = vmatpush1.bf16.msra.mxu0 0
      %97 = vmatprep.subr.bf16.mxu0 0
      %98 = vmatpush1.bf16.msra.mxu0 0
      %99 = vmatprep.subr.bf16.mxu0 0
      %100 = vmatpush1.bf16.msra.mxu0 0
      %101 = vmatprep.subr.bf16.mxu0 0
      %102 = vmatpush1.bf16.msra.mxu0 0
      %103 = vmatprep.subr.bf16.mxu0 0
      %104 = vmatpush1.bf16.msra.mxu0 0
      %105 = vmatprep.subr.bf16.mxu0 0
      %106 = vmatpush1.bf16.msra.mxu0 %v86
      %107 = vmatprep.subr.bf16.mxu0 0
      %108 = vmatpush1.bf16.msra.mxu0 %v85
      %109 = vmatprep.subr.bf16.mxu0 0
      %110 = vmatpush2.bf16.msra.mxu0 0
      %111 = vmatprep.subr.bf16.mxu0 0
      %112 = vmatpush2.bf16.msra.mxu0 0
      %113 = vmatprep.subr.bf16.mxu0 0
      %114 = vmatpush2.bf16.msra.mxu0 0
      %115 = vmatprep.subr.bf16.mxu0 0
      %116 = vmatpush2.bf16.msra.mxu0 0
      %117 = vmatprep.subr.bf16.mxu0 0
      %118 = vmatpush2.bf16.msra.mxu0 0
      %119 = vmatprep.subr.bf16.mxu0 0
      %120 = vmatpush2.bf16.msra.mxu0 0
      %121 = vmatprep.subr.bf16.mxu0 0
      %122 = vmatpush2.bf16.msra.mxu0 0
      %123 = vmatprep.subr.bf16.mxu0 0
      %124 = vmatpush2.bf16.msra.mxu0 0
      %125 = vmatprep.mubr.bf16.mxu0 0
      %126 = vmatmul.mubr.bf16.gmra.mxu0 %v91
      %v127 = vpop.f32.mrf.mxu0
      %v128 = vadd.f32 %v75, %v127
      %v129 = vpop.f32.mrf.mxu0
      %v130 = vpop.f32.mrf.mxu0
      %v131 = vpop.f32.mrf.mxu0
      %132 = vdwg.mxu0
      %v133 = vmax.f32 %v128, 0.0
      %vm134 = vcmask 517120
      %135 = vst.msk [vmem:[#allocation2] sm:$0x3] %vm134, %v133
    $region37: #{tpu_custom_call.1} parent=1 // pred_fallthru
      _
    %v136 = vld [vmem:[#allocation2] sm:$0x3]
    %v137 = vpack.c.bf16 %v136, %v136
    %v138 = vld [vmem:[#allocation8] sm:$0xff]
    %v139 = vld [vmem:[#allocation8 + $0x8] sm:$0xff]
    %v140 = vld [vmem:[#allocation8 + $0x10] sm:$0xff]
    %v141 = vld [vmem:[#allocation8 + $0x18] sm:$0xff]
    %v142 = vld [vmem:[#allocation8 + $0x20] sm:$0xff]
    %v143 = vld [vmem:[#allocation8 + $0x28] sm:$0xff]
    %v144 = vld [vmem:[#allocation8 + $0x30] sm:$0xff]
    %v145 = vld [vmem:[#allocation8 + $0x38] sm:$0xff]
    %v146 = vld [vmem:[%s4] sm:$0x3]
    %v148 = vlaneseq
    %v149 = vshrl.u32 %v148, 7
    %v150 = vsub.s32 0, %v149
    %v151 = vrot.slane %v146, %v150
    %v152 = vlaneseq
    %v153 = vshrl.u32 %v152, 7
    %v154 = vsub.s32 1, %v153
    %v155 = vrot.slane %v146, %v154
    %v166 = vunpack.c.l.b16 %v138
    %v167 = vunpack.c.h.b16 %v138
    %v168 = vunpack.c.l.b16 %v139
    %v169 = vunpack.c.h.b16 %v139
    %v170 = vunpack.c.l.b16 %v140
    %v171 = vunpack.c.h.b16 %v140
    %v172 = vunpack.c.l.b16 %v141
    %v173 = vunpack.c.h.b16 %v141
    %v174 = vunpack.c.l.b16 %v142
    %v175 = vunpack.c.h.b16 %v142
    %v176 = vunpack.c.l.b16 %v143
    %v177 = vunpack.c.h.b16 %v143
    %v178 = vunpack.c.l.b16 %v144
    %v179 = vunpack.c.h.b16 %v144
    %v180 = vunpack.c.l.b16 %v145
    %v181 = vunpack.c.h.b16 %v145
    %v182 = vpack.c.b16 %v168, %v166
    %v183 = vpack.c.b16 %v169, %v167
    %v184 = vpack.c.b16 %v172, %v170
    %v185 = vpack.c.b16 %v173, %v171
    %v186 = vpack.c.b16 %v176, %v174
    %v187 = vpack.c.b16 %v177, %v175
    %v188 = vpack.c.b16 %v180, %v178
    %v189 = vpack.c.b16 %v181, %v179
    %vm198 = vcmask 523264
    %v200 = vsel %vm198, %v137, 0
    %202 = vmatprep.subr.bf16.mxu0 0
    %203 = vmatpush1.bf16.msra.mxu0 0
    %204 = vmatprep.subr.bf16.mxu0 0
    %205 = vmatpush1.bf16.msra.mxu0 0
    %206 = vmatprep.subr.bf16.mxu0 0
    %207 = vmatpush1.bf16.msra.mxu0 0
    %208 = vmatprep.subr.bf16.mxu0 0
    %209 = vmatpush1.bf16.msra.mxu0 0
    %210 = vmatprep.subr.bf16.mxu0 %v189
    %211 = vmatpush1.bf16.msra.mxu0 %v188
    %212 = vmatprep.subr.bf16.mxu0 %v187
    %213 = vmatpush1.bf16.msra.mxu0 %v186
    %214 = vmatprep.subr.bf16.mxu0 %v185
    %215 = vmatpush1.bf16.msra.mxu0 %v184
    %216 = vmatprep.subr.bf16.mxu0 %v183
    %217 = vmatpush1.bf16.msra.mxu0 %v182
    %218 = vmatprep.subr.bf16.mxu0 0
    %219 = vmatpush2.bf16.msra.mxu0 0
    %220 = vmatprep.subr.bf16.mxu0 0
    %221 = vmatpush2.bf16.msra.mxu0 0
    %222 = vmatprep.subr.bf16.mxu0 0
    %223 = vmatpush2.bf16.msra.mxu0 0
    %224 = vmatprep.subr.bf16.mxu0 0
    %225 = vmatpush2.bf16.msra.mxu0 0
    %226 = vmatprep.subr.bf16.mxu0 0
    %227 = vmatpush2.bf16.msra.mxu0 0
    %228 = vmatprep.subr.bf16.mxu0 0
    %229 = vmatpush2.bf16.msra.mxu0 0
    %230 = vmatprep.subr.bf16.mxu0 0
    %231 = vmatpush2.bf16.msra.mxu0 0
    %232 = vmatprep.subr.bf16.mxu0 0
    %233 = vmatpush2.bf16.msra.mxu0 0
    %234 = vmatprep.mubr.bf16.mxu0 0
    %235 = vmatmul.mubr.bf16.gmra.mxu0 %v200
    %v236 = vpop.f32.mrf.mxu0
    %v237 = vadd.f32 %v151, %v236
    %v238 = vpop.f32.mrf.mxu0
    %v239 = vadd.f32 %v155, %v238
    %v240 = vpop.f32.mrf.mxu0
    %v241 = vpop.f32.mrf.mxu0
    %242 = vdwg.mxu0
    %v245 = vcombine.low %v237, %v239
    %v247 = vunpack.c.l.s4 1983009808
    %v248 = vunpack.c.0.s8 %v247
    %v249 = vlaneseq
    %v250 = vshrl.u32 %v249, 7
    %v251 = vsub.s32 %v248, %v250
    %v252 = vrot.slane %v245, %v251
    %254 = vst [vmem:[#allocation9] sm:$0xf] %v252
    // Predicated region
    $region38: #{tpu_custom_call.1} parent=1 // pred_check
      _
    $region39: #{tpu_custom_call.1} parent=1 // pred_check_branch
      %256 = sbr.rel (0) target = $region41
    $region40: #{tpu_custom_call.1} parent=1 // pred_region
      %s258 = ssub.s32 64, 64
      %259 = vsyncadd [#allocation5], %s258
      %s261 = sshll.u32 [#allocation9], 4
      %s262 = int_to_ptr.vmem [resolvable:$true] %s261
      %264 = dma.vmem_to_hbm [thread:$0]  %s262, 64, %s5, [#allocation5]
    $region41: #{tpu_custom_call.1} parent=1 // pred_fallthru
      _
    // Predicated region
    $region42: #{tpu_custom_call.1} parent=1 // pred_check
      _
    $region43: #{tpu_custom_call.1} parent=1 // pred_check_branch
      %266 = sbr.rel (0) target = $region45
    $region44: #{tpu_custom_call.1} parent=1 // pred_region
      %267 = dma.done [#allocation5], 64
    $region45: #{tpu_custom_call.1} parent=1 // pred_fallthru
      _
    %268 = vsyncpa [#allocation4], 1
    %269 = vsyncpa [#allocation7], 1
    %270 = vsyncpa [#allocation5], 1

</llo_original>
